<compile_context>
chip_gen: v6e
topology: v6e:2x2x1
jax: 0.10.0
libtpu: 0.0.40
codegen_flags: <defaults>
</compile_context>

<pallas_src>
import functools
import numpy as np
import jax
import jax.numpy as jnp
from jax.experimental import pallas as pl
from jax.experimental.pallas import tpu as pltpu


def _default_vmem_limit():
    # Portable scoped-VMEM budget: half of physical capacity, capped at 64 MiB.
    try:
        cap = pltpu.get_tpu_info().vmem_capacity_bytes
    except Exception:
        cap = 128 * 1024 * 1024
    return int(min(cap // 2, 64 * 1024 * 1024))


_VMEM_LIMIT = _default_vmem_limit()


def _row_tile(n, max_tile=256):
    """Largest multiple-of-8 tile <= max_tile that divides n (else the full n)."""
    if n <= max_tile:
        return n
    t = max_tile - (max_tile % 8)
    while t >= 8:
        if n % t == 0:
            return t
        t -= 8
    return n  # fallback: single block (fine for the small shapes used here)


def _edge_tile(e, max_tile=1024):
    """Edge tile: multiple of 128 dividing e (else full e)."""
    t = max_tile
    while t >= 128:
        if e % t == 0:
            return t
        t -= 128
    return e


# ----------------------------- Pallas kernels -------------------------------

def _linear_kernel(x_ref, w_ref, b_ref, o_ref, *, relu):
    y = jnp.dot(x_ref[...].astype(jnp.bfloat16), w_ref[...],
                preferred_element_type=jnp.float32) + b_ref[...]
    if relu:
        y = jnp.maximum(y, 0.0)
    o_ref[...] = y


def linear(x, w, b, *, relu):
    n, d_in = x.shape
    d_out = w.shape[1]
    tn = _row_tile(n)
    return pl.pallas_call(
        functools.partial(_linear_kernel, relu=relu),
        out_shape=jax.ShapeDtypeStruct((n, d_out), jnp.float32),
        grid=(n // tn,),
        in_specs=[
            pl.BlockSpec((tn, d_in), lambda i: (i, 0)),
            pl.BlockSpec((d_in, d_out), lambda i: (0, 0)),
            pl.BlockSpec((1, d_out), lambda i: (0, 0)),
        ],
        out_specs=pl.BlockSpec((tn, d_out), lambda i: (i, 0)),
        compiler_params=pltpu.CompilerParams(
            dimension_semantics=("parallel",),
            vmem_limit_bytes=_VMEM_LIMIT),
    )(x, w.astype(jnp.bfloat16), b.reshape(1, -1))


def _emulsion_order_kernel(x_sel_ref, xi_ref, xj_ref, ef_ref, dst_ref,
                           w_i_ref, w_d_ref, w_e_ref, b_ref, o_ref, *, tn_sel):
    e_step = pl.program_id(1)

    @pl.when(e_step == 0)
    def _():
        o_ref[...] = jnp.zeros_like(o_ref)          # accumulate directly in the resident output

    # message MLP, reformulated:  relu(x_i @ (Wi - Wd) + x_j @ Wd + ef @ We + b)
    msg = (jnp.dot(xi_ref[...].astype(jnp.bfloat16), w_i_ref[...],
                   preferred_element_type=jnp.float32)
           + jnp.dot(xj_ref[...].astype(jnp.bfloat16), w_d_ref[...],
                     preferred_element_type=jnp.float32)
           + b_ref[...])
    if ef_ref.shape[1] == 1:
        # edge_dim == 1: rank-1 broadcast on the VPU (f32, exact) instead of a K=1 MXU op
        msg = msg + ef_ref[...] * w_e_ref[...]
    else:
        msg = msg + jnp.dot(ef_ref[...], w_e_ref[...], preferred_element_type=jnp.float32)
    msg = jnp.maximum(msg, 0.0)                      # (TE, H)

    # scatter_add(msg, dst) as a bf16 one-hot matmul, restricted to THIS node tile's window
    te = msg.shape[0]
    node_base = pl.program_id(0) * tn_sel
    rows = jax.lax.broadcasted_iota(jnp.int32, (tn_sel, te), 0) + node_base
    onehot = (rows == dst_ref[...]).astype(jnp.bfloat16)          # exact 0/1
    o_ref[...] += jnp.dot(onehot, msg.astype(jnp.bfloat16),
                          preferred_element_type=jnp.float32)

    @pl.when(e_step == pl.num_programs(1) - 1)
    def _():
        # x[nodes_selected] = (x[nodes_selected] + scatter_add(message)) / 2
        o_ref[...] = (x_sel_ref[...] + o_ref[...]) * 0.5


def emulsion_order(x_sel, x_i, x_j, ef, dst, w, w_e, b):
    n_sel, hidden = x_sel.shape
    e_sel = x_i.shape[0]
    edge_dim = ef.shape[1]
    tn = _row_tile(n_sel)
    te = _edge_tile(e_sel)
    w_i = (w[:hidden] - w[hidden:]).astype(jnp.bfloat16)   # multiplies x_i
    w_d = w[hidden:].astype(jnp.bfloat16)                  # multiplies x_j
    return pl.pallas_call(
        functools.partial(_emulsion_order_kernel, tn_sel=tn),
        out_shape=jax.ShapeDtypeStruct((n_sel, hidden), jnp.float32),
        grid=(n_sel // tn, e_sel // te),
        in_specs=[
            pl.BlockSpec((tn, hidden), lambda i, e: (i, 0)),        # resident node tile
            pl.BlockSpec((te, hidden), lambda i, e: (e, 0)),        # streamed x_i
            pl.BlockSpec((te, hidden), lambda i, e: (e, 0)),        # streamed x_j
            pl.BlockSpec((te, edge_dim), lambda i, e: (e, 0)),      # streamed edge features
            pl.BlockSpec((1, te), lambda i, e: (0, e)),             # streamed dst indices
            pl.BlockSpec((hidden, hidden), lambda i, e: (0, 0)),
            pl.BlockSpec((hidden, hidden), lambda i, e: (0, 0)),
            pl.BlockSpec((edge_dim, hidden), lambda i, e: (0, 0)),
            pl.BlockSpec((1, hidden), lambda i, e: (0, 0)),
        ],
        out_specs=pl.BlockSpec((tn, hidden), lambda i, e: (i, 0)),  # resident accumulator
        compiler_params=pltpu.CompilerParams(
            dimension_semantics=("parallel", "arbitrary"),
            vmem_limit_bytes=_VMEM_LIMIT),
    )(x_sel, x_i, x_j, ef, dst.reshape(1, -1).astype(jnp.int32),
      w_i, w_d, w_e.astype(jnp.float32), b.reshape(1, -1))


def _edge_conv_kernel(x_ref, xj_ref, w_base_ref, w_d_ref, b_ref, o_ref, *, k_deg):
    # k-invariant part computed ONCE per node tile:  base = x_i @ (Wi - Wd) + b
    base = jnp.dot(x_ref[...].astype(jnp.bfloat16), w_base_ref[...],
                   preferred_element_type=jnp.float32) + b_ref[...]
    w_d = w_d_ref[...]
    acc = None
    for k in range(k_deg):                                          # static unrolled loop
        msg = jnp.maximum(base + jnp.dot(xj_ref[k].astype(jnp.bfloat16), w_d,
                                         preferred_element_type=jnp.float32), 0.0)
        acc = msg if acc is None else jnp.maximum(acc, msg)
    o_ref[...] = acc


def edge_conv(x, x_j_by_k, w, b):
    # x_j_by_k: (K, N, H); [k, n] = x[k-th in-neighbor of node n]  (edges are k-regular and
    # sorted by destination, so degree-regular 'max' aggregation == segment_max over dst).
    n, hidden = x.shape
    k_deg = x_j_by_k.shape[0]
    tn = _row_tile(n)
    w_base = (w[:hidden] - w[hidden:]).astype(jnp.bfloat16)   # Wi - Wd
    w_d = w[hidden:].astype(jnp.bfloat16)                     # Wd
    return pl.pallas_call(
        functools.partial(_edge_conv_kernel, k_deg=k_deg),
        out_shape=jax.ShapeDtypeStruct((n, hidden), jnp.float32),
        grid=(n // tn,),
        in_specs=[
            pl.BlockSpec((tn, hidden), lambda i: (i, 0)),              # x_i node tile
            pl.BlockSpec((k_deg, tn, hidden), lambda i: (0, i, 0)),    # all K neighbors, 1 DMA
            pl.BlockSpec((hidden, hidden), lambda i: (0, 0)),
            pl.BlockSpec((hidden, hidden), lambda i: (0, 0)),
            pl.BlockSpec((1, hidden), lambda i: (0, 0)),
        ],
        out_specs=pl.BlockSpec((tn, hidden), lambda i: (i, 0)),
        compiler_params=pltpu.CompilerParams(
            dimension_semantics=("parallel",),
            vmem_limit_bytes=_VMEM_LIMIT),
    )(x, x_j_by_k, w_base, w_d, b.reshape(1, -1))


# ----------------------------- forward pass ---------------------------------

def graphnn_forward(params, x, edge_index, orders, edge_features, orders_preprocessed):
    num_nodes = x.shape[0]
    num_edges = edge_index.shape[1]
    k_deg = num_edges // num_nodes
    # edges sorted by dst with exactly k_deg incoming edges per node:
    # row k of (K, N) holds the k-th in-neighbor of every node.
    src_by_k = jnp.transpose(edge_index[0].reshape(num_nodes, k_deg)).reshape(-1)

    # emulsion blocks: [Linear+ReLU, EmulsionConv] x num_layers_emulsion
    for p in params["emul"]:
        x = linear(x, p["lin_w"], p["lin_b"], relu=True)
        hidden = x.shape[1]
        for oi, eids in enumerate(orders):
            if eids.size == 0:          # mirrors `if order.sum():`
                continue
            nodes_sel, adj = orders_preprocessed[oi]
            # TODO(synk): fuse these gathers + the writeback into the kernel
            # (scalar-prefetch adj/nodes_sel, input_output_aliases on x).
            x_sel = x[nodes_sel]
            x_j = x_sel[adj[0]]
            x_i = x_sel[adj[1]]
            ef = edge_features[eids]
            out_sel = emulsion_order(x_sel, x_i, x_j, ef, adj[0],   # _direction == 0
                                     p["mp_w"], p["mp_w_e"], p["mp_b"])
            x = x.at[nodes_sel].set(out_sel)               # scatter-update (XLA glue)

    # EdgeConv blocks with 'max' aggregation
    for p in params["edge"]:
        x_j_by_k = x[src_by_k].reshape(k_deg, num_nodes, x.shape[1])
        x = edge_conv(x, x_j_by_k, p["w"], p["b"])

    # output head (no ReLU)
    return linear(x, params["out_w"], params["out_b"], relu=False)


# ------------------------- pure-JAX reference -------------------------------
# Mirrors the kernels' precision policy (bf16 matmul operands, f32 accumulation,
# same (Wi - Wd)/Wd algebraic reformulation -- identical to the PyTorch math in exact
# arithmetic: x_i@W1 + (x_j - x_i)@W2 == x_i@(W1 - W2) + x_j@W2).

def ref_forward(params, x, edge_index, orders, edge_features, orders_preprocessed):
    bf16 = jnp.bfloat16

    def lin(v, w, b, relu=True):
        y = jnp.dot(v.astype(bf16), w.astype(bf16),
                    preferred_element_type=jnp.float32) + b
        return jnp.maximum(y, 0.0) if relu else y

    for p in params["emul"]:
        x = lin(x, p["lin_w"], p["lin_b"])
        h = x.shape[1]
        w_i = (p["mp_w"][:h] - p["mp_w"][h:]).astype(bf16)
        w_d = p["mp_w"][h:].astype(bf16)
        for oi, eids in enumerate(orders):
            if eids.size == 0:
                continue
            nodes_sel, adj = orders_preprocessed[oi]
            x_sel = x[nodes_sel]
            x_j = x_sel[adj[0]]
            x_i = x_sel[adj[1]]
            msg = (jnp.dot(x_i.astype(bf16), w_i, preferred_element_type=jnp.float32)
                   + jnp.dot(x_j.astype(bf16), w_d, preferred_element_type=jnp.float32)
                   + p["mp_b"])
            msg = msg + edge_features[eids] @ p["mp_w_e"]
            msg = jnp.maximum(msg, 0.0)
            agg = jnp.zeros((nodes_sel.shape[0], h), jnp.float32)
            agg = agg.at[adj[0]].add(msg.astype(bf16).astype(jnp.float32))
            x = x.at[nodes_sel].set((x_sel + agg) / 2.0)

    src, dst = edge_index[0], edge_index[1]
    for p in params["edge"]:
        h = x.shape[1]
        w_base = (p["w"][:h] - p["w"][h:]).astype(bf16)
        w_d = p["w"][h:].astype(bf16)
        msg = jnp.maximum(
            jnp.dot(x[dst].astype(bf16), w_base, preferred_element_type=jnp.float32)
            + jnp.dot(x[src].astype(bf16), w_d, preferred_element_type=jnp.float32)
            + p["b"], 0.0)
        x = jax.ops.segment_max(msg, dst, num_segments=x.shape[0])

    return jnp.dot(x.astype(bf16), params["out_w"].astype(bf16),
                   preferred_element_type=jnp.float32) + params["out_b"]


# ------------------------------ setup glue -----------------------------------

def init_params(key, input_dim, hidden, edge_dim, output_dim, n_emul, n_edge):
    def linear_init(k, fan_in, fan_out):
        bound = 1.0 / np.sqrt(fan_in)
        w = jax.random.uniform(k, (fan_in, fan_out), jnp.float32, -bound, bound)
        b = jnp.zeros((fan_out,), jnp.float32)   # init_bias_model(model, b=0.0)
        return w, b

    keys = jax.random.split(key, 2 * n_emul + n_edge + 1)
    ki = 0
    params = {"emul": [], "edge": []}
    prev = input_dim
    for _ in range(n_emul):
        lin_w, lin_b = linear_init(keys[ki], prev, hidden); ki += 1
        mp_w_full, mp_b = linear_init(keys[ki], 2 * hidden + edge_dim, hidden); ki += 1
        params["emul"].append(dict(
            lin_w=lin_w, lin_b=lin_b,
            mp_w=mp_w_full[:2 * hidden],       # [x_i | x_j - x_i] part
            mp_w_e=mp_w_full[2 * hidden:],     # edge-feature part (edge_dim, H)
            mp_b=mp_b))
        prev = hidden
    for _ in range(n_edge):
        w, b = linear_init(keys[ki], 2 * hidden, hidden); ki += 1
        params["edge"].append(dict(w=w, b=b))
    out_w, out_b = linear_init(keys[ki], hidden, output_dim)
    params["out_w"], params["out_b"] = out_w, out_b
    return params


def build_graph(n_nodes, k):
    # k-NN-like ring graph, sorted by dst with exactly k incoming edges per node.
    dst = np.repeat(np.arange(n_nodes), k)
    src = (dst + np.tile(np.arange(1, k + 1), n_nodes)) % n_nodes
    return np.stack([src, dst]).astype(np.int32)   # (2, E)


def preprocess_order(edge_index, eids):
    # mirrors data.orders_preprocessed: unique nodes of selected edges + locally remapped adjacency
    sel = edge_index[:, eids]
    nodes_sel = np.unique(sel)
    remap = np.searchsorted(nodes_sel, sel)
    return nodes_sel.astype(np.int32), remap.astype(np.int32)


if __name__ == "__main__":
    N, K = 128, 8
    input_dim, hidden, edge_dim, output_dim = 4, 32, 1, 10
    num_layers_emulsion, num_layers_edge_conv = 3, 3

    edge_index_np = build_graph(N, K)
    E = edge_index_np.shape[1]
    # EdgeConv kernel relies on dst-sorted, k-regular edges (true for build_graph).
    assert np.array_equal(edge_index_np[1], np.repeat(np.arange(N), K))

    # two "orders" partitioning the edge set (stored as index arrays instead of bool masks)
    orders_np = [np.arange(0, E // 2, dtype=np.int32), np.arange(E // 2, E, dtype=np.int32)]
    orders_pre_np = [preprocess_order(edge_index_np, e) for e in orders_np]

    key = jax.random.PRNGKey(0)
    kx, ke, kp = jax.random.split(key, 3)
    x = jax.random.normal(kx, (N, input_dim), jnp.float32)
    edge_features = jax.random.normal(ke, (E, edge_dim), jnp.float32)
    params = init_params(kp, input_dim, hidden, edge_dim, output_dim,
                         num_layers_emulsion, num_layers_edge_conv)

    edge_index = jnp.asarray(edge_index_np)
    orders = [jnp.asarray(e) for e in orders_np]
    orders_preprocessed = [(jnp.asarray(a), jnp.asarray(b)) for a, b in orders_pre_np]

    out = graphnn_forward(params, x, edge_index, orders, edge_features, orders_preprocessed)
    out = jax.block_until_ready(out)
    assert out.shape == (N, output_dim)

    ref = ref_forward(params, x, edge_index, orders, edge_features, orders_preprocessed)
    ref = jax.block_until_ready(ref)
    np.testing.assert_allclose(np.asarray(out), np.asarray(ref), rtol=1e-2, atol=1e-2)

    print("KERNEL_OK")
</pallas_src>

<mosaic_0001>
module attributes {stable_mosaic.version = 11 : i64} {
  func.func @_linear_kernel(%arg0: i32, %arg1: memref<128x4xf32, #tpu.memory_space<vmem>>, %arg2: memref<4x32xbf16, #tpu.memory_space<vmem>>, %arg3: memref<1x32xf32, #tpu.memory_space<vmem>>, %arg4: memref<128x32xf32, #tpu.memory_space<vmem>>) attributes {dimension_semantics = [#tpu.dimension_semantics<parallel>], iteration_bounds = array<i64: 1>, scalar_prefetch = 0 : i64, scratch_operands = 0 : i64, tpu.core_type = #tpu.core_type<tc>, window_params = [{transform_indices = @transform_0, window_bounds = array<i64: 128, 4>}, {pipeline_mode = #tpu.pipeline_mode<synchronous>, transform_indices = @transform_1, window_bounds = array<i64: 4, 32>}, {pipeline_mode = #tpu.pipeline_mode<synchronous>, transform_indices = @transform_2, window_bounds = array<i64: 1, 32>}, {transform_indices = @transform_3, window_bounds = array<i64: 128, 32>}]} {
    %c0 = arith.constant 0 : index
    %c0_0 = arith.constant 0 : index
    %0 = vector.load %arg1[%c0, %c0_0] : memref<128x4xf32, #tpu.memory_space<vmem>>, vector<128x4xf32>
    %1 = arith.truncf %0 : vector<128x4xf32> to vector<128x4xbf16>
    %c0_1 = arith.constant 0 : index
    %c0_2 = arith.constant 0 : index
    %2 = vector.load %arg2[%c0_1, %c0_2] : memref<4x32xbf16, #tpu.memory_space<vmem>>, vector<4x32xbf16>
    %cst = arith.constant dense<0.000000e+00> : vector<128x32xf32>
    %3 = tpu.matmul %1, %2, %cst {dimension_numbers = #tpu.dot_dimension_numbers<[1], [0], [0], [1], [0, 0, 1, 1], [], []>} : vector<128x4xbf16>, vector<4x32xbf16>, vector<128x32xf32> -> vector<128x32xf32>
    %c0_3 = arith.constant 0 : index
    %c0_4 = arith.constant 0 : index
    %4 = vector.load %arg3[%c0_3, %c0_4] : memref<1x32xf32, #tpu.memory_space<vmem>>, vector<1x32xf32>
    %5 = vector.broadcast %4 : vector<1x32xf32> to vector<128x32xf32>
    %6 = arith.addf %3, %5 : vector<128x32xf32>
    %cst_5 = arith.constant 0.000000e+00 : f32
    %7 = vector.broadcast %cst_5 : f32 to vector<128x32xf32>
    %8 = arith.maximumf %6, %7 : vector<128x32xf32>
    %c0_6 = arith.constant 0 : index
    %c0_7 = arith.constant 0 : index
    %9 = vector.load %arg4[%c0_6, %c0_7] : memref<128x32xf32, #tpu.memory_space<vmem>>, vector<128x32xf32>
    tpu.vector_store %arg4[%c0_6, %c0_7], %8 {strides = array<i32>} : memref<128x32xf32, #tpu.memory_space<vmem>>, vector<128x32xf32>,
    return
  }
  func.func @transform_0(%arg0: i32) -> (i32, i32) {
    %c0_i32 = arith.constant 0 : i32
    %c0_i32_0 = arith.constant 0 : i32
    return %arg0, %c0_i32 : i32, i32
  }
  func.func @transform_1(%arg0: i32) -> (i32, i32) {
    %c0_i32 = arith.constant 0 : i32
    %c0_i32_0 = arith.constant 0 : i32
    %c0_i32_1 = arith.constant 0 : i32
    return %c0_i32, %c0_i32_0 : i32, i32
  }
  func.func @transform_2(%arg0: i32) -> (i32, i32) {
    %c0_i32 = arith.constant 0 : i32
    %c0_i32_0 = arith.constant 0 : i32
    %c0_i32_1 = arith.constant 0 : i32
    return %c0_i32, %c0_i32_0 : i32, i32
  }
  func.func @transform_3(%arg0: i32) -> (i32, i32) {
    %c0_i32 = arith.constant 0 : i32
    %c0_i32_0 = arith.constant 0 : i32
    return %arg0, %c0_i32 : i32, i32
  }
}

</mosaic_0001>

<llo_original>
// kernel: tpu_custom_call.1
$region0: #{tpu_custom_call.1}
  #allocation0 [shape = 'u32[]', space=smem, size = 0x4, offset = 0x4, fixed_abs, tag = 'smem constant byte address 0x4 - core index']
  #allocation1 [shape = 'u32[144,128]{1,0:T(1,128)}', space=vmem, size = 0x12000, scoped, tag = 'internal scratch']
  %s0 = inlined_call_operand.vmem [shape: f32[128,4], index: 0, kind: input, shape index: {}]
  %s1 = inlined_call_operand.vmem [shape: bf16[4,32], index: 1, kind: input, shape index: {}]
  %s2 = inlined_call_operand.vmem [shape: f32[1,32], index: 2, kind: input, shape index: {}]
  %s3 = inlined_call_operand.vmem [shape: f32[128,32], index: 3, kind: output, shape index: {}]
  %s4 = sld [smem:[#allocation0]]
  $region22: #{tpu_custom_call.1} parent=0
    _
  %s6 = ssub.s32 1, %s4
  %s7 = scalar_select 0, %s6, %s4
  // Predicated region
  $region2: #{tpu_custom_call.1} parent=0 // pred_check
    _
  $region3: #{tpu_custom_call.1} parent=0 // pred_check_branch
    %9 = sbr.rel (0) target = $region5
  $region4: #{tpu_custom_call.1} parent=0 // pred_region
    _
  $region5: #{tpu_custom_call.1} parent=0 // pred_fallthru
    _
  // Predicated region
  $region6: #{tpu_custom_call.1} parent=0 // pred_check
    _
  $region7: #{tpu_custom_call.1} parent=0 // pred_check_branch
    %11 = sbr.rel (0) target = $region9
  $region8: #{tpu_custom_call.1} parent=0 // pred_region
    _
  $region9: #{tpu_custom_call.1} parent=0 // pred_fallthru
    _
  // Predicated region
  $region10: #{tpu_custom_call.1} parent=0 // pred_check
    _
  $region11: #{tpu_custom_call.1} parent=0 // pred_check_branch
    %13 = sbr.rel (0) target = $region13
  $region12: #{tpu_custom_call.1} parent=0 // pred_region
    _
  $region13: #{tpu_custom_call.1} parent=0 // pred_fallthru
    _
  %v15 = vld [vmem:[%s0] sm:$0xff]
  %v16 = vld [vmem:[%s0 + $0x8] sm:$0xff]
  %v17 = vld [vmem:[%s0 + $0x10] sm:$0xff]
  %v18 = vld [vmem:[%s0 + $0x18] sm:$0xff]
  %v19 = vld [vmem:[%s0 + $0x20] sm:$0xff]
  %v20 = vld [vmem:[%s0 + $0x28] sm:$0xff]
  %v21 = vld [vmem:[%s0 + $0x30] sm:$0xff]
  %v22 = vld [vmem:[%s0 + $0x38] sm:$0xff]
  %v23 = vld [vmem:[%s0 + $0x40] sm:$0xff]
  %v24 = vld [vmem:[%s0 + $0x48] sm:$0xff]
  %v25 = vld [vmem:[%s0 + $0x50] sm:$0xff]
  %v26 = vld [vmem:[%s0 + $0x58] sm:$0xff]
  %v27 = vld [vmem:[%s0 + $0x60] sm:$0xff]
  %v28 = vld [vmem:[%s0 + $0x68] sm:$0xff]
  %v29 = vld [vmem:[%s0 + $0x70] sm:$0xff]
  %v30 = vld [vmem:[%s0 + $0x78] sm:$0xff]
  %v31 = vpack.c.bf16 %v16, %v15
  %v32 = vpack.c.bf16 %v18, %v17
  %v33 = vpack.c.bf16 %v20, %v19
  %v34 = vpack.c.bf16 %v22, %v21
  %v35 = vpack.c.bf16 %v24, %v23
  %v36 = vpack.c.bf16 %v26, %v25
  %v37 = vpack.c.bf16 %v28, %v27
  %v38 = vpack.c.bf16 %v30, %v29
  %v39 = vld [vmem:[%s1] sm:$0x3]
  %v40 = vld [vmem:[%s2] sm:$0x1]
  %v42 = vlaneseq
  %v43 = vshrl.u32 %v42, 7
  %v44 = vsub.s32 0, %v43
  %v45 = vrot.slane %v40, %v44
  %vm47 = vcmask 31744
  %v49 = vsel %vm47, %v31, 0
  %v52 = vsel %vm47, %v32, 0
  %v55 = vsel %vm47, %v33, 0
  %v58 = vsel %vm47, %v34, 0
  %v61 = vsel %vm47, %v35, 0
  %v64 = vsel %vm47, %v36, 0
  %v67 = vsel %vm47, %v37, 0
  %v70 = vsel %vm47, %v38, 0
  %vm72 = vcmask 1041408
  %v74 = vsel %vm72, %v39, 0
  %76 = vmatprep.subr.bf16.mxu0 0
  %77 = vmatpush1.bf16.msra.mxu0 0
  %78 = vmatprep.subr.bf16.mxu0 0
  %79 = vmatpush1.bf16.msra.mxu0 0
  %80 = vmatprep.subr.bf16.mxu0 0
  %81 = vmatpush1.bf16.msra.mxu0 0
  %82 = vmatprep.subr.bf16.mxu0 0
  %83 = vmatpush1.bf16.msra.mxu0 0
  %84 = vmatprep.subr.bf16.mxu0 0
  %85 = vmatpush1.bf16.msra.mxu0 0
  %86 = vmatprep.subr.bf16.mxu0 0
  %87 = vmatpush1.bf16.msra.mxu0 0
  %88 = vmatprep.subr.bf16.mxu0 0
  %89 = vmatpush1.bf16.msra.mxu0 0
  %90 = vmatprep.subr.bf16.mxu0 0
  %91 = vmatpush1.bf16.msra.mxu0 %v74
  %92 = vmatprep.subr.bf16.mxu0 0
  %93 = vmatpush2.bf16.msra.mxu0 0
  %94 = vmatprep.subr.bf16.mxu0 0
  %95 = vmatpush2.bf16.msra.mxu0 0
  %96 = vmatprep.subr.bf16.mxu0 0
  %97 = vmatpush2.bf16.msra.mxu0 0
  %98 = vmatprep.subr.bf16.mxu0 0
  %99 = vmatpush2.bf16.msra.mxu0 0
  %100 = vmatprep.subr.bf16.mxu0 0
  %101 = vmatpush2.bf16.msra.mxu0 0
  %102 = vmatprep.subr.bf16.mxu0 0
  %103 = vmatpush2.bf16.msra.mxu0 0
  %104 = vmatprep.subr.bf16.mxu0 0
  %105 = vmatpush2.bf16.msra.mxu0 0
  %106 = vmatprep.subr.bf16.mxu0 0
  %107 = vmatpush2.bf16.msra.mxu0 0
  %108 = vmatprep.mubr.bf16.mxu0 0
  %109 = vmatmul.mubr.bf16.gmra.mxu0 %v49
  %v110 = vpop.f32.mrf.mxu0
  %v111 = vadd.f32 %v45, %v110
  %v112 = vpop.f32.mrf.mxu0
  %v113 = vpop.f32.mrf.mxu0
  %v114 = vadd.f32 %v45, %v113
  %v115 = vpop.f32.mrf.mxu0
  %116 = vmatprep.mubr.bf16.mxu0 0
  %117 = vmatmul.mubr.bf16.gmra.mxu0 %v52
  %v118 = vpop.f32.mrf.mxu0
  %v119 = vadd.f32 %v45, %v118
  %v120 = vpop.f32.mrf.mxu0
  %v121 = vpop.f32.mrf.mxu0
  %v122 = vadd.f32 %v45, %v121
  %v123 = vpop.f32.mrf.mxu0
  %124 = vmatprep.mubr.bf16.mxu0 0
  %125 = vmatmul.mubr.bf16.gmra.mxu0 %v55
  %v126 = vpop.f32.mrf.mxu0
  %v127 = vadd.f32 %v45, %v126
  %v128 = vpop.f32.mrf.mxu0
  %v129 = vpop.f32.mrf.mxu0
  %v130 = vadd.f32 %v45, %v129
  %v131 = vpop.f32.mrf.mxu0
  %132 = vmatprep.mubr.bf16.mxu0 0
  %133 = vmatmul.mubr.bf16.gmra.mxu0 %v58
  %v134 = vpop.f32.mrf.mxu0
  %v135 = vadd.f32 %v45, %v134
  %v136 = vpop.f32.mrf.mxu0
  %v137 = vpop.f32.mrf.mxu0
  %v138 = vadd.f32 %v45, %v137
  %v139 = vpop.f32.mrf.mxu0
  %140 = vmatprep.mubr.bf16.mxu0 0
  %141 = vmatmul.mubr.bf16.gmra.mxu0 %v61
  %v142 = vpop.f32.mrf.mxu0
  %v143 = vadd.f32 %v45, %v142
  %v144 = vpop.f32.mrf.mxu0
  %v145 = vpop.f32.mrf.mxu0
  %v146 = vadd.f32 %v45, %v145
  %v147 = vpop.f32.mrf.mxu0
  %148 = vmatprep.mubr.bf16.mxu0 0
  %149 = vmatmul.mubr.bf16.gmra.mxu0 %v64
  %v150 = vpop.f32.mrf.mxu0
  %v151 = vadd.f32 %v45, %v150
  %v152 = vpop.f32.mrf.mxu0
  %v153 = vpop.f32.mrf.mxu0
  %v154 = vadd.f32 %v45, %v153
  %v155 = vpop.f32.mrf.mxu0
  %156 = vmatprep.mubr.bf16.mxu0 0
  %157 = vmatmul.mubr.bf16.gmra.mxu0 %v67
  %v158 = vpop.f32.mrf.mxu0
  %v159 = vadd.f32 %v45, %v158
  %v160 = vpop.f32.mrf.mxu0
  %v161 = vpop.f32.mrf.mxu0
  %v162 = vadd.f32 %v45, %v161
  %v163 = vpop.f32.mrf.mxu0
  %164 = vmatprep.mubr.bf16.mxu0 0
  %165 = vmatmul.mubr.bf16.gmra.mxu0 %v70
  %v166 = vpop.f32.mrf.mxu0
  %v167 = vadd.f32 %v45, %v166
  %v168 = vpop.f32.mrf.mxu0
  %v169 = vpop.f32.mrf.mxu0
  %v170 = vadd.f32 %v45, %v169
  %v171 = vpop.f32.mrf.mxu0
  %172 = vdwg.mxu0
  %v173 = vmax.f32 %v111, 0.0
  %v174 = vmax.f32 %v114, 0.0
  %v175 = vmax.f32 %v119, 0.0
  %v176 = vmax.f32 %v122, 0.0
  %v177 = vmax.f32 %v127, 0.0
  %v178 = vmax.f32 %v130, 0.0
  %v179 = vmax.f32 %v135, 0.0
  %v180 = vmax.f32 %v138, 0.0
  %v181 = vmax.f32 %v143, 0.0
  %v182 = vmax.f32 %v146, 0.0
  %v183 = vmax.f32 %v151, 0.0
  %v184 = vmax.f32 %v154, 0.0
  %v185 = vmax.f32 %v159, 0.0
  %v186 = vmax.f32 %v162, 0.0
  %v187 = vmax.f32 %v167, 0.0
  %v188 = vmax.f32 %v170, 0.0
  %vm189 = vcmask 261120
  %190 = vst.msk [vmem:[%s3] sm:$0xff] %vm189, %v173
  %191 = vst.msk [vmem:[%s3 + $0x8] sm:$0xff] %vm189, %v174
  %192 = vst.msk [vmem:[%s3 + $0x10] sm:$0xff] %vm189, %v175
  %193 = vst.msk [vmem:[%s3 + $0x18] sm:$0xff] %vm189, %v176
  %194 = vst.msk [vmem:[%s3 + $0x20] sm:$0xff] %vm189, %v177
  %195 = vst.msk [vmem:[%s3 + $0x28] sm:$0xff] %vm189, %v178
  %196 = vst.msk [vmem:[%s3 + $0x30] sm:$0xff] %vm189, %v179
  %197 = vst.msk [vmem:[%s3 + $0x38] sm:$0xff] %vm189, %v180
  %198 = vst.msk [vmem:[%s3 + $0x40] sm:$0xff] %vm189, %v181
  %199 = vst.msk [vmem:[%s3 + $0x48] sm:$0xff] %vm189, %v182
  %200 = vst.msk [vmem:[%s3 + $0x50] sm:$0xff] %vm189, %v183
  %201 = vst.msk [vmem:[%s3 + $0x58] sm:$0xff] %vm189, %v184
  %202 = vst.msk [vmem:[%s3 + $0x60] sm:$0xff] %vm189, %v185
  %203 = vst.msk [vmem:[%s3 + $0x68] sm:$0xff] %vm189, %v186
  %204 = vst.msk [vmem:[%s3 + $0x70] sm:$0xff] %vm189, %v187
  %205 = vst.msk [vmem:[%s3 + $0x78] sm:$0xff] %vm189, %v188
  // Predicated region
  $region14: #{tpu_custom_call.1} parent=0 // pred_check
    _
  $region15: #{tpu_custom_call.1} parent=0 // pred_check_branch
    %207 = sbr.rel (0) target = $region17
  $region16: #{tpu_custom_call.1} parent=0 // pred_region
    _
  $region17: #{tpu_custom_call.1} parent=0 // pred_fallthru
    _
  // Predicated region
  $region18: #{tpu_custom_call.1} parent=0 // pred_check
    _
  $region19: #{tpu_custom_call.1} parent=0 // pred_check_branch
    %209 = sbr.rel (0) target = $region21
  $region20: #{tpu_custom_call.1} parent=0 // pred_region
    _
  $region21: #{tpu_custom_call.1} parent=0 // pred_fallthru
    _

</llo_original>
